<compile_context>
chip_gen: v7x
topology: tpu7x:2x2x1
jax: 0.10.0
libtpu: 0.0.40
codegen_flags: <defaults>
</compile_context>

<pallas_src>
import functools

import jax
import jax.numpy as jnp
from jax.experimental import pallas as pl
from jax.experimental.pallas import tpu as pltpu


def _repeat_lanes(block, reps):
    """(Bt, C) -> (Bt, reps*C): tile along lanes with a log-depth concat."""
    out = block
    have = 1
    while have * 2 <= reps:
        out = jnp.concatenate([out, out], axis=1)
        have *= 2
    if have < reps:
        out = jnp.concatenate(
            [out, out[:, : (reps - have) * block.shape[1]]], axis=1)
    return out


def _decomp_kernel(x_ref, res_ref, mean_ref, *, kernel_size, pad, seq_len,
                   channels):
    """x_ref/res_ref/mean_ref: (Bt, L*C) flattened tiles."""
    L, C = seq_len, channels
    F = L * C
    x = x_ref[...].astype(jnp.float32)          # single HBM read of the tile

    # Replicate-padded series, built entirely in registers (no VMEM scratch).
    if pad > 0:
        front = _repeat_lanes(x[:, :C], pad)       # pad copies of x[:, 0, :]
        back = _repeat_lanes(x[:, F - C:], pad)    # pad copies of x[:, L-1, :]
        xp = jnp.concatenate([front, x, back], axis=1)   # (Bt, (L+2*pad)*C)
    else:
        xp = x

    def shift_left(v, t_shift):
        # result[:, i] = v[:, i + t_shift*C]  (circular lane rotate).  The
        # wrapped tail lanes are provably never consumed: garbage stays in
        # lanes >= Fp - total_shift*C >= F for every term of the tree.
        s = t_shift * C
        return jnp.concatenate([v[:, s:], v[:, :s]], axis=1)

    # Window-doubling tree: S_k[t] = sum_{j=0}^{k-1} xp[t + j].
    acc = None            # running sum over a window of width `done`
    win = xp              # window sum of width `w`
    done, w, kk = 0, 1, kernel_size
    while True:
        if kk & 1:
            acc = win if acc is None else acc + shift_left(win, done)
            done += w
        kk >>= 1
        if kk == 0:
            break
        win = win + shift_left(win, w)
        w *= 2

    mean_f32 = acc[:, :F] * (1.0 / kernel_size)   # keep only the exact lanes
    if mean_ref.dtype == jnp.float32:
        mean_ref[...] = mean_f32
        res_ref[...] = x - mean_f32
    else:
        # Match PyTorch for sub-f32 dtypes: res = x - moving_mean with the mean
        # already rounded to the storage dtype (<= 1 ulp drift).
        mean_cast = mean_f32.astype(mean_ref.dtype)
        mean_ref[...] = mean_cast
        res_ref[...] = (x - mean_cast.astype(jnp.float32)).astype(res_ref.dtype)


def _choose_batch_tile(B, row_bytes):
    """Rows per block: ~2 MiB per block array; Bt is either B or a multiple of 8."""
    target = 2 * 1024 * 1024
    bt = max(1, target // max(row_bytes, 1))
    if bt >= B:
        bt = B
    else:
        bt = min(max(8, (bt // 8) * 8), B)
    # Keep >= 2 steps on the "parallel" grid axis when the batch allows it
    # (v7x has two TensorCores; also restores DMA/compute overlap).
    if bt == B and B >= 16:
        bt = min(B, ((-(-B // 2) + 7) // 8) * 8)
    return bt


def series_decomp(x, kernel_size):
    """x: (B, L, C). Returns (res, moving_mean), each (B, L, C)."""
    assert kernel_size >= 1 and kernel_size % 2 == 1, (
        "kernel_size must be odd so output length == L")
    B, L, C = x.shape
    pad = (kernel_size - 1) // 2
    flat = L * C

    xf = x.reshape(B, flat)          # contiguous -> free reshape, no HBM pass
    bt = _choose_batch_tile(B, flat * x.dtype.itemsize)
    grid = (pl.cdiv(B, bt),)

    kernel = functools.partial(
        _decomp_kernel, kernel_size=kernel_size, pad=pad, seq_len=L, channels=C)

    res, mean = pl.pallas_call(
        kernel,
        out_shape=(
            jax.ShapeDtypeStruct((B, flat), x.dtype),
            jax.ShapeDtypeStruct((B, flat), x.dtype),
        ),
        grid_spec=pltpu.PrefetchScalarGridSpec(
            num_scalar_prefetch=0,
            grid=grid,
            in_specs=[pl.BlockSpec((bt, flat), lambda b: (b, 0))],
            out_specs=[
                pl.BlockSpec((bt, flat), lambda b: (b, 0)),
                pl.BlockSpec((bt, flat), lambda b: (b, 0)),
            ],
        ),
        compiler_params=pltpu.CompilerParams(
            dimension_semantics=("parallel",),
            vmem_limit_bytes=48 * 1024 * 1024,
        ),
    )(xf)
    return res.reshape(B, L, C), mean.reshape(B, L, C)


def _reference(x, kernel_size):
    """Pure-JAX reference mirroring the PyTorch module."""
    pad = (kernel_size - 1) // 2
    front = jnp.repeat(x[:, 0:1, :], pad, axis=1)
    end = jnp.repeat(x[:, -1:, :], pad, axis=1)
    xp = jnp.concatenate([front, x, end], axis=1)
    windows = jnp.stack(
        [xp[:, j:j + x.shape[1], :] for j in range(kernel_size)], axis=0)
    mean = jnp.mean(windows, axis=0)
    return x - mean, mean


def _check(B, L, C, kernel_size, key):
    x = jax.random.normal(key, (B, L, C), dtype=jnp.float32)
    res, mean = series_decomp(x, kernel_size)
    res, mean = jax.block_until_ready(res), jax.block_until_ready(mean)
    res_ref, mean_ref = _reference(x, kernel_size)
    assert res.shape == (B, L, C) and mean.shape == (B, L, C)
    assert jnp.allclose(mean, mean_ref, atol=1e-5, rtol=1e-5), "mean mismatch"
    assert jnp.allclose(res, res_ref, atol=1e-5, rtol=1e-5), "res mismatch"


if __name__ == "__main__":
    key = jax.random.PRNGKey(0)
    k1, k2 = jax.random.split(key)
    # Primary small example (typical series_decomp usage shape).
    _check(B=2, L=16, C=8, kernel_size=5, key=k1)
    # Larger moving-average window exercising the multi-level doubling tree.
    _check(B=4, L=32, C=8, kernel_size=25, key=k2)
    print("KERNEL_OK")
</pallas_src>

<mosaic_0001>
module attributes {stable_mosaic.version = 11 : i64} {
  func.func @_decomp_kernel(%arg0: i32, %arg1: memref<2x128xf32, #tpu.memory_space<vmem>>, %arg2: memref<2x128xf32, #tpu.memory_space<vmem>>, %arg3: memref<2x128xf32, #tpu.memory_space<vmem>>) attributes {dimension_semantics = [#tpu.dimension_semantics<parallel>], iteration_bounds = array<i64: 1>, scalar_prefetch = 0 : i64, scratch_operands = 0 : i64, tpu.core_type = #tpu.core_type<tc>, window_params = [{transform_indices = @transform_0, window_bounds = array<i64: 2, 128>}, {transform_indices = @transform_1, window_bounds = array<i64: 2, 128>}, {transform_indices = @transform_2, window_bounds = array<i64: 2, 128>}]} {
    %c0 = arith.constant 0 : index
    %c0_0 = arith.constant 0 : index
    %0 = vector.load %arg1[%c0, %c0_0] : memref<2x128xf32, #tpu.memory_space<vmem>>, vector<2x128xf32>
    %1 = vector.extract_strided_slice %0 {offsets = [0, 0], sizes = [2, 8], strides = [1, 1]} : vector<2x128xf32> to vector<2x8xf32>
    %2 = tpu.concatenate %1, %1 in 1 : vector<2x8xf32>, vector<2x8xf32> -> vector<2x16xf32>
    %3 = vector.extract_strided_slice %0 {offsets = [0, 120], sizes = [2, 8], strides = [1, 1]} : vector<2x128xf32> to vector<2x8xf32>
    %4 = tpu.concatenate %3, %3 in 1 : vector<2x8xf32>, vector<2x8xf32> -> vector<2x16xf32>
    %5 = tpu.concatenate %2, %0, %4 in 1 : vector<2x16xf32>, vector<2x128xf32>, vector<2x16xf32> -> vector<2x160xf32>
    %6 = vector.extract_strided_slice %5 {offsets = [0, 8], sizes = [2, 152], strides = [1, 1]} : vector<2x160xf32> to vector<2x152xf32>
    %7 = vector.extract_strided_slice %5 {offsets = [0, 0], sizes = [2, 8], strides = [1, 1]} : vector<2x160xf32> to vector<2x8xf32>
    %8 = tpu.concatenate %6, %7 in 1 : vector<2x152xf32>, vector<2x8xf32> -> vector<2x160xf32>
    %9 = arith.addf %5, %8 : vector<2x160xf32>
    %10 = vector.extract_strided_slice %9 {offsets = [0, 16], sizes = [2, 144], strides = [1, 1]} : vector<2x160xf32> to vector<2x144xf32>
    %11 = vector.extract_strided_slice %9 {offsets = [0, 0], sizes = [2, 16], strides = [1, 1]} : vector<2x160xf32> to vector<2x16xf32>
    %12 = tpu.concatenate %10, %11 in 1 : vector<2x144xf32>, vector<2x16xf32> -> vector<2x160xf32>
    %13 = arith.addf %9, %12 : vector<2x160xf32>
    %14 = vector.extract_strided_slice %13 {offsets = [0, 8], sizes = [2, 152], strides = [1, 1]} : vector<2x160xf32> to vector<2x152xf32>
    %15 = vector.extract_strided_slice %13 {offsets = [0, 0], sizes = [2, 8], strides = [1, 1]} : vector<2x160xf32> to vector<2x8xf32>
    %16 = tpu.concatenate %14, %15 in 1 : vector<2x152xf32>, vector<2x8xf32> -> vector<2x160xf32>
    %17 = arith.addf %5, %16 : vector<2x160xf32>
    %18 = vector.extract_strided_slice %17 {offsets = [0, 0], sizes = [2, 128], strides = [1, 1]} : vector<2x160xf32> to vector<2x128xf32>
    %cst = arith.constant 2.000000e-01 : f32
    %19 = vector.broadcast %cst : f32 to vector<2x128xf32>
    %20 = arith.mulf %18, %19 : vector<2x128xf32>
    %c0_1 = arith.constant 0 : index
    %c0_2 = arith.constant 0 : index
    %21 = vector.load %arg3[%c0_1, %c0_2] : memref<2x128xf32, #tpu.memory_space<vmem>>, vector<2x128xf32>
    tpu.vector_store %arg3[%c0_1, %c0_2], %20 {strides = array<i32>} : memref<2x128xf32, #tpu.memory_space<vmem>>, vector<2x128xf32>,
    %22 = arith.subf %0, %20 : vector<2x128xf32>
    %c0_3 = arith.constant 0 : index
    %c0_4 = arith.constant 0 : index
    %23 = vector.load %arg2[%c0_3, %c0_4] : memref<2x128xf32, #tpu.memory_space<vmem>>, vector<2x128xf32>
    tpu.vector_store %arg2[%c0_3, %c0_4], %22 {strides = array<i32>} : memref<2x128xf32, #tpu.memory_space<vmem>>, vector<2x128xf32>,
    return
  }
  func.func @transform_0(%arg0: i32) -> (i32, i32) {
    %c0_i32 = arith.constant 0 : i32
    %c0_i32_0 = arith.constant 0 : i32
    return %arg0, %c0_i32 : i32, i32
  }
  func.func @transform_1(%arg0: i32) -> (i32, i32) {
    %c0_i32 = arith.constant 0 : i32
    %c0_i32_0 = arith.constant 0 : i32
    return %arg0, %c0_i32 : i32, i32
  }
  func.func @transform_2(%arg0: i32) -> (i32, i32) {
    %c0_i32 = arith.constant 0 : i32
    %c0_i32_0 = arith.constant 0 : i32
    return %arg0, %c0_i32 : i32, i32
  }
}

</mosaic_0001>

<llo_original>
// kernel: tpu_custom_call.1
$region0: #{tpu_custom_call.1}
  #allocation0 [shape = 'u32[]', space=smem, size = 0x4, offset = 0x4, fixed_abs, tag = 'smem constant byte address 0x4 - core index']
  #allocation1 [shape = 'u32[144,128]{1,0:T(1,128)}', space=vmem, size = 0x12000, scoped, tag = 'internal scratch']
  %s0 = inlined_call_operand.hbm [shape: f32[2,128], index: 0, kind: input, shape index: {}]
  %s1 = inlined_call_operand.hbm [shape: f32[2,128], index: 1, kind: output, shape index: {0}]
  %s2 = inlined_call_operand.hbm [shape: f32[2,128], index: 2, kind: output, shape index: {1}]
  %3 = xla_tuple %s1, %s2
  %s4 = sld [smem:[#allocation0]]
  $region26: #{tpu_custom_call.1} parent=0
    _
  %s6 = ssub.s32 1, %s4
  %s7 = scalar_select 0, %s6, %s4
  $region1: #{tpu_custom_call.1} parent=0
    #allocation2 [shape = 'u8[1024]{0}', space=vmem, size = 0x400, scoped, tag = 'input window, operand 0, single buffered']
    #allocation3 [shape = 's32[1]{0}', space=sflag, size = 0x4, scoped, tag = 'scoped memory for tpu_custom_call.1']
    #allocation4 [shape = 's32[1]{0}', space=sflag, size = 0x4, scoped, tag = 'scoped memory for tpu_custom_call.1']
    #allocation5 [shape = 'u8[1024]{0}', space=vmem, size = 0x400, scoped, tag = 'output window, operand 0, single buffered']
    #allocation6 [shape = 'u8[1024]{0}', space=vmem, size = 0x400, scoped, tag = 'output window, operand 1, single buffered']
    #allocation7 [shape = 's32[1]{0}', space=sflag, size = 0x4, scoped, tag = 'scoped memory for tpu_custom_call.1']
    %8 = vsyncpa [#allocation3], 0
    %9 = vsyncpa [#allocation4], 0
    %10 = vsyncpa [#allocation7], 0
    // Predicated region
    $region2: #{tpu_custom_call.1} parent=1 // pred_check
      _
    $region3: #{tpu_custom_call.1} parent=1 // pred_check_branch
      %12 = sbr.rel (0) target = $region5
    $region4: #{tpu_custom_call.1} parent=1 // pred_region
      %s14 = ssub.s32 32, 32
      %15 = vsyncadd [#allocation3], %s14
      %s17 = sshll.u32 [#allocation2], 4
      %s18 = int_to_ptr.vmem [resolvable:$true] %s17
      %20 = dma.hbm_to_vmem [thread:$0]  %s0, 32, %s18, [#allocation3]
    $region5: #{tpu_custom_call.1} parent=1 // pred_fallthru
      _
    // Predicated region
    $region6: #{tpu_custom_call.1} parent=1 // pred_check
      _
    $region7: #{tpu_custom_call.1} parent=1 // pred_check_branch
      %22 = sbr.rel (0) target = $region9
    $region8: #{tpu_custom_call.1} parent=1 // pred_region
      %23 = dma.done [#allocation3], 32
    $region9: #{tpu_custom_call.1} parent=1 // pred_fallthru
      _
    %v24 = vld [vmem:[#allocation2] sm:$0x3]
    %26 = vrot.lane.b32.xlu0 %v24, 8
    %v27 = vpop.permute.xlu0 %26
    %vm29 = vcmask 64512
    %v30 = vsel %vm29, %v24, %v27
    %31 = vrot.lane.b32.xlu0 %v24, 16
    %v32 = vpop.permute.xlu0 %31
    %v34 = vsel %vm29, %v27, %v32
    %36 = vrot.lane.b32.xlu0 %v34, 16
    %v37 = vpop.permute.xlu0 %36
    %vm39 = vcmask 130048
    %v40 = vsel %vm39, %v30, %v32
    %v41 = vsel %vm39, %v32, %v37
    %44 = vrot.lane.b32.xlu0 %v40, 120
    %v45 = vpop.permute.xlu0 %44
    %46 = vrot.lane.b32.xlu0 %v41, 120
    %v47 = vpop.permute.xlu0 %46
    %vm48 = vcmask 982016
    %v49 = vsel %vm48, %v45, %v47
    %52 = vrot.lane.b32.xlu0 %v40, 24
    %v53 = vpop.permute.xlu0 %52
    %vm55 = vcmask 195584
    %v56 = vsel %vm55, %v47, %v53
    %v57 = vadd.f32 %v40, %v49
    %v58 = vadd.f32 %v41, %v56
    %61 = vrot.lane.b32.xlu0 %v57, 112
    %v62 = vpop.permute.xlu0 %61
    %63 = vrot.lane.b32.xlu0 %v58, 112
    %v64 = vpop.permute.xlu0 %63
    %vm65 = vcmask 916480
    %v66 = vsel %vm65, %v62, %v64
    %69 = vrot.lane.b32.xlu0 %v57, 16
    %v70 = vpop.permute.xlu0 %69
    %v72 = vsel %vm39, %v64, %v70
    %v73 = vadd.f32 %v57, %v66
    %v74 = vadd.f32 %v58, %v72
    %77 = vrot.lane.b32.xlu0 %v73, 120
    %v78 = vpop.permute.xlu0 %77
    %79 = vrot.lane.b32.xlu0 %v74, 120
    %v80 = vpop.permute.xlu0 %79
    %v81 = vsel %vm48, %v78, %v80
    %v83 = vadd.f32 %v40, %v81
    %v84 = vmul.f32 %v83, 0.2
    %85 = vst [vmem:[#allocation6] sm:$0x3] %v84
    %v86 = vsub.f32 %v24, %v84
    %87 = vst [vmem:[#allocation5] sm:$0x3] %v86
    // Predicated region
    $region10: #{tpu_custom_call.1} parent=1 // pred_check
      _
    $region11: #{tpu_custom_call.1} parent=1 // pred_check_branch
      %89 = sbr.rel (0) target = $region13
    $region12: #{tpu_custom_call.1} parent=1 // pred_region
      %s91 = ssub.s32 32, 32
      %92 = vsyncadd [#allocation4], %s91
      %s94 = sshll.u32 [#allocation5], 4
      %s95 = int_to_ptr.vmem [resolvable:$true] %s94
      %97 = dma.vmem_to_hbm [thread:$0]  %s95, 32, %s1, [#allocation4]
    $region13: #{tpu_custom_call.1} parent=1 // pred_fallthru
      _
    // Predicated region
    $region14: #{tpu_custom_call.1} parent=1 // pred_check
      _
    $region15: #{tpu_custom_call.1} parent=1 // pred_check_branch
      %99 = sbr.rel (0) target = $region17
    $region16: #{tpu_custom_call.1} parent=1 // pred_region
      %s101 = ssub.s32 32, 32
      %102 = vsyncadd [#allocation7], %s101
      %s104 = sshll.u32 [#allocation6], 4
      %s105 = int_to_ptr.vmem [resolvable:$true] %s104
      %107 = dma.vmem_to_hbm [thread:$0]  %s105, 32, %s2, [#allocation7]
    $region17: #{tpu_custom_call.1} parent=1 // pred_fallthru
      _
    // Predicated region
    $region18: #{tpu_custom_call.1} parent=1 // pred_check
      _
    $region19: #{tpu_custom_call.1} parent=1 // pred_check_branch
      %109 = sbr.rel (0) target = $region21
    $region20: #{tpu_custom_call.1} parent=1 // pred_region
      %110 = dma.done [#allocation4], 32
    $region21: #{tpu_custom_call.1} parent=1 // pred_fallthru
      _
    // Predicated region
    $region22: #{tpu_custom_call.1} parent=1 // pred_check
      _
    $region23: #{tpu_custom_call.1} parent=1 // pred_check_branch
      %112 = sbr.rel (0) target = $region25
    $region24: #{tpu_custom_call.1} parent=1 // pred_region
      %113 = dma.done [#allocation7], 32
    $region25: #{tpu_custom_call.1} parent=1 // pred_fallthru
      _
    %114 = vsyncpa [#allocation3], 1
    %115 = vsyncpa [#allocation4], 1
    %116 = vsyncpa [#allocation7], 1

</llo_original>
